<compile_context>
chip_gen: v5e
topology: v5e:2x2
jax: 0.10.0
libtpu: 0.0.40
codegen_flags: <defaults>
</compile_context>

<pallas_src>
import functools

import jax
import jax.numpy as jnp
from jax.experimental import pallas as pl
from jax.experimental.pallas import tpu as pltpu


def _round_up(x, m):
    return ((x + m - 1) // m) * m


def _vq_kernel(x_ref, e_ref, et_ref, q_ref, idx_ref, sse_ref, *,
               valid_lanes, use_mxu):
    """One (batch, lane-tile): distances -> argmin -> codebook select -> partial SSE."""
    D, TL = x_ref.shape
    M = e_ref.shape[0]

    x = x_ref[...].astype(jnp.float32)        # (D, TL)  rows on lanes, dim on sublanes
    e = e_ref[...].astype(jnp.float32)        # (M, D)   resident (constant index_map)
    et = et_ref[...].astype(jnp.float32)      # (D, M)   resident (constant index_map)

    if use_mxu:
        # Production-size codebook: push the heavy terms through the MXU.
        # dist[m, l] = ||x[:, l]||^2 + ||e[m, :]||^2 - 2 * e[m, :] . x[:, l]
        # NOTE: ties vs. the sum-of-squares form can shift by ~1 ulp.
        x2 = jnp.sum(x * x, axis=0, keepdims=True)                       # (1, TL)
        e2 = jnp.sum(e * e, axis=1, keepdims=True)                       # (M, 1)
        dist = (e2 - 2.0 * jnp.dot(e, x, preferred_element_type=jnp.float32)) + x2
        dmin = jnp.min(dist, axis=0, keepdims=True)                      # (1, TL)
        iota_m = jax.lax.broadcasted_iota(jnp.int32, (M, TL), 0)
        idx = jnp.min(jnp.where(dist == dmin, iota_m, M),
                      axis=0, keepdims=True)                             # (1, TL) i32
        onehot = (iota_m == idx).astype(jnp.float32)                     # (M, TL)
        q = jnp.dot(et, onehot, preferred_element_type=jnp.float32)      # (D, TL)
    else:
        # Tiny M/D: distances as D VPU FMAs on full (M, TL) vregs (M rides the
        # sublane axis), then a fused running (argmin, gather) select loop.
        dist = jnp.zeros((M, TL), jnp.float32)
        for d in range(D):
            diff = x[d:d + 1, :] - e[:, d:d + 1]                         # (M, TL)
            dist = dist + diff * diff
        dmin = jnp.min(dist, axis=0, keepdims=True)                      # (1, TL)

        # Descending m: the last write wins, so the final value is the smallest
        # matching m == first-occurrence tie-break (torch.argmin semantics).
        # dmin is the min of these exact dist values, so `==` is safe.
        idx = jnp.zeros((1, TL), jnp.int32)
        q = jnp.zeros((D, TL), jnp.float32)
        for m in range(M - 1, -1, -1):
            hit = dist[m:m + 1, :] == dmin                               # (1, TL)
            idx = jnp.where(hit, m, idx)
            q = jnp.where(hit, et[:, m:m + 1], q)                        # (D, TL)

    idx_ref[...] = idx
    q_ref[...] = q.astype(q_ref.dtype)

    # Per-tile partial SSE, masked to valid lanes (last tile may be lane-padded).
    # Each grid step owns its own (8,128) output block -> no resident accumulator,
    # both grid axes stay "parallel".  With large TL there are few steps, so this
    # 4 KiB side-store is noise.
    lane = jax.lax.broadcasted_iota(jnp.int32, (1, TL), 1) + pl.program_id(1) * TL
    valid = (lane < valid_lanes).astype(jnp.float32)                     # (1, TL)
    d2 = (q - x) * (q - x) * valid                                       # (D, TL)
    sse = jnp.sum(jnp.sum(d2, axis=1, keepdims=True), axis=0, keepdims=True)
    sse_ref[...] = jnp.zeros((8, 128), jnp.float32) + sse


class VectorQuantizerPallas:
    """Forward pass of the PyTorch VectorQuantizer (eval mode)."""

    def __init__(self, num_embeddings, embedding_dim, commitment_cost, key):
        self._num_embeddings = num_embeddings
        self._embedding_dim = embedding_dim
        self._commitment_cost = commitment_cost
        bound = 1.0 / num_embeddings
        # nn.Embedding weight init: uniform(-1/M, 1/M), shape (M, D)
        self.embedding = jax.random.uniform(
            key, (num_embeddings, embedding_dim),
            minval=-bound, maxval=bound, dtype=jnp.float32)

    def __call__(self, inputs, reset=False, tile_lanes=8192, return_encodings=True):
        # TODO(synk): training-mode codebook reset (host-side np.random row picks +
        # in-place embedding mutation) has no forward-pass effect in eval; not implemented.
        del reset
        B, C, H, W = inputs.shape
        M, D = self.embedding.shape
        assert C == D, "channels must equal embedding_dim"
        HW = H * W
        L = B * HW

        # NCHW is already (B, D, HW) with positions lane-dense -> free reshape,
        # no HBM-copying transposes on either side of the kernel.
        x = inputs.reshape(B, D, HW).astype(jnp.float32)

        TL = min(_round_up(tile_lanes, 128), _round_up(HW, 128))   # large lane tiles
        HWp = _round_up(HW, TL)
        if HWp != HW:
            x = jnp.pad(x, ((0, 0), (0, 0), (0, HWp - HW)))
        Gi = HWp // TL

        e = self.embedding.astype(jnp.float32)   # (M, D)
        # et is 128 B and traced once; keeping it as a second input avoids an
        # in-kernel relayout, and its constant index_map keeps it resident (no
        # per-step re-DMA).
        et = e.T                                  # (D, M)

        use_mxu = (M >= 128) or (D >= 32)
        kernel = functools.partial(_vq_kernel, valid_lanes=HW, use_mxu=use_mxu)

        q, idx, sse_parts = pl.pallas_call(
            kernel,
            out_shape=(
                jax.ShapeDtypeStruct((B, D, HWp), jnp.float32),      # quantized (NCHW-flat)
                jax.ShapeDtypeStruct((B, 1, HWp), jnp.int32),        # argmin indices
                jax.ShapeDtypeStruct((B, Gi * 8, 128), jnp.float32),  # per-tile SSE partials
            ),
            grid_spec=pltpu.PrefetchScalarGridSpec(
                num_scalar_prefetch=0,
                grid=(B, Gi),
                in_specs=[
                    pl.BlockSpec((pl.Squeezed(), D, TL), lambda b, i: (b, 0, i)),
                    pl.BlockSpec((M, D), lambda b, i: (0, 0)),
                    pl.BlockSpec((D, M), lambda b, i: (0, 0)),
                ],
                out_specs=[
                    pl.BlockSpec((pl.Squeezed(), D, TL), lambda b, i: (b, 0, i)),
                    pl.BlockSpec((pl.Squeezed(), 1, TL), lambda b, i: (b, 0, i)),
                    pl.BlockSpec((pl.Squeezed(), 8, 128), lambda b, i: (b, i, 0)),
                ],
            ),
            compiler_params=pltpu.CompilerParams(
                # No resident accumulators -> both axes fully parallel (megacore
                # sharding on v7x; no-op on single-TC v5e/v6e).  Grid >= B steps.
                dimension_semantics=("parallel", "parallel"),
                vmem_limit_bytes=32 * 1024 * 1024,   # safe on v5e/v6e/v7x
            ),
        )(x, e, et)

        # ---- plain-JAX epilogues (free reshapes + scalars) ----
        if HWp != HW:
            q = q[:, :, :HW]
            idx = idx[:, :, :HW]
        quantized = q.reshape(B, D, H, W)                              # already NCHW
        idx_flat = idx[:, 0, :].reshape(L)                             # (b, h, w) order

        sse = jnp.sum(sse_parts[:, ::8, 0])
        mse = sse / (L * D)
        # q_latent_loss and e_latent_loss have identical forward values.
        loss = (1.0 + self._commitment_cost) * mse

        # Perplexity via scatter-add bincount (no L x M one-hot needed for it).
        counts = jnp.zeros((M,), jnp.float32).at[idx_flat].add(1.0)
        avg_probs = counts / L
        perplexity = jnp.exp(-jnp.sum(avg_probs * jnp.log(avg_probs + 1e-10)))

        # The full (L, M) one-hot is only built when the caller wants it.
        encodings = (jax.nn.one_hot(idx_flat, M, dtype=jnp.float32)
                     if return_encodings else None)

        # Straight-through (inputs + (quantized - inputs).detach()) only changes
        # gradients; forward value is `quantized`.
        return loss, quantized, perplexity, encodings


def _reference_forward(inputs, embedding, commitment_cost):
    """Plain-JAX transcription of the torch forward (eval mode) for checking."""
    B, C, H, W = inputs.shape
    M, D = embedding.shape
    x_nhwc = jnp.transpose(inputs, (0, 2, 3, 1))
    flat = x_nhwc.reshape(-1, D)
    dist = (jnp.sum(flat ** 2, axis=1, keepdims=True)
            + jnp.sum(embedding ** 2, axis=1)
            - 2.0 * flat @ embedding.T)
    idx = jnp.argmin(dist, axis=1)
    enc = jax.nn.one_hot(idx, M, dtype=jnp.float32)
    q = (enc @ embedding).reshape(B, H, W, D)
    mse = jnp.mean((q - x_nhwc) ** 2)
    loss = (1.0 + commitment_cost) * mse
    avg = jnp.mean(enc, axis=0)
    perp = jnp.exp(-jnp.sum(avg * jnp.log(avg + 1e-10)))
    return loss, jnp.transpose(q, (0, 3, 1, 2)), perp, enc


if __name__ == "__main__":
    key = jax.random.PRNGKey(0)
    k_emb, k_x1, k_x2, k_x3 = jax.random.split(key, 4)

    num_embeddings, embedding_dim, commitment_cost = 8, 4, 0.25
    vq = VectorQuantizerPallas(num_embeddings, embedding_dim, commitment_cost, k_emb)

    def check(x, tile_lanes):
        loss, quantized, perplexity, encodings = vq(x, tile_lanes=tile_lanes)
        jax.block_until_ready((loss, quantized, perplexity, encodings))
        B, C, H, W = x.shape
        assert quantized.shape == (B, C, H, W)
        assert encodings.shape == (B * H * W, num_embeddings)
        loss_r, q_r, perp_r, enc_r = _reference_forward(x, vq.embedding, commitment_cost)
        assert jnp.allclose(quantized, q_r, atol=1e-5), "quantized mismatch"
        assert jnp.allclose(loss, loss_r, rtol=1e-5, atol=1e-7), "loss mismatch"
        assert jnp.allclose(perplexity, perp_r, rtol=1e-5), "perplexity mismatch"
        assert jnp.allclose(encodings, enc_r), "encodings mismatch"

    # main toy config
    check(jax.random.normal(k_x1, (2, 4, 16, 16), dtype=jnp.float32), tile_lanes=8192)
    # multiple lane tiles per image (Gi > 1)
    check(jax.random.normal(k_x2, (1, 4, 32, 32), dtype=jnp.float32), tile_lanes=256)
    # lane-padding path (H*W not a multiple of 128)
    check(jax.random.normal(k_x3, (2, 4, 10, 10), dtype=jnp.float32), tile_lanes=8192)

    print("KERNEL_OK")
</pallas_src>

<mosaic_0001>
module attributes {stable_mosaic.version = 11 : i64} {
  func.func @_vq_kernel(%arg0: i32, %arg1: i32, %arg2: memref<1x4x256xf32, #tpu.memory_space<vmem>>, %arg3: memref<8x4xf32, #tpu.memory_space<vmem>>, %arg4: memref<4x8xf32, #tpu.memory_space<vmem>>, %arg5: memref<1x4x256xf32, #tpu.memory_space<vmem>>, %arg6: memref<1x1x256xi32, #tpu.memory_space<vmem>>, %arg7: memref<1x8x128xf32, #tpu.memory_space<vmem>>) attributes {dimension_semantics = [#tpu.dimension_semantics<parallel>, #tpu.dimension_semantics<parallel>], iteration_bounds = array<i64: 2, 1>, scalar_prefetch = 0 : i64, scratch_operands = 0 : i64, tpu.core_type = #tpu.core_type<tc>, window_params = [{transform_indices = @transform_0, window_bounds = array<i64: 1, 4, 256>}, {pipeline_mode = #tpu.pipeline_mode<synchronous>, transform_indices = @transform_1, window_bounds = array<i64: 8, 4>}, {pipeline_mode = #tpu.pipeline_mode<synchronous>, transform_indices = @transform_2, window_bounds = array<i64: 4, 8>}, {transform_indices = @transform_3, window_bounds = array<i64: 1, 4, 256>}, {transform_indices = @transform_4, window_bounds = array<i64: 1, 1, 256>}, {transform_indices = @transform_5, window_bounds = array<i64: 1, 8, 128>}]} {
    %c0 = arith.constant 0 : index
    %c0_0 = arith.constant 0 : index
    %c0_1 = arith.constant 0 : index
    %0 = vector.load %arg2[%c0, %c0_0, %c0_1] : memref<1x4x256xf32, #tpu.memory_space<vmem>>, vector<1x4x256xf32>
    %1 = vector.shape_cast %0 : vector<1x4x256xf32> to vector<4x256xf32>
    %c0_2 = arith.constant 0 : index
    %c0_3 = arith.constant 0 : index
    %2 = vector.load %arg3[%c0_2, %c0_3] : memref<8x4xf32, #tpu.memory_space<vmem>>, vector<8x4xf32>
    %c0_4 = arith.constant 0 : index
    %c0_5 = arith.constant 0 : index
    %3 = vector.load %arg4[%c0_4, %c0_5] : memref<4x8xf32, #tpu.memory_space<vmem>>, vector<4x8xf32>
    %cst = arith.constant 0.000000e+00 : f32
    %4 = vector.broadcast %cst : f32 to vector<8x256xf32>
    %5 = vector.extract_strided_slice %1 {offsets = [0, 0], sizes = [1, 256], strides = [1, 1]} : vector<4x256xf32> to vector<1x256xf32>
    %6 = vector.extract_strided_slice %2 {offsets = [0, 0], sizes = [8, 1], strides = [1, 1]} : vector<8x4xf32> to vector<8x1xf32>
    %7 = vector.broadcast %5 : vector<1x256xf32> to vector<8x256xf32>
    %8 = vector.broadcast %6 : vector<8x1xf32> to vector<8x256xf32>
    %9 = arith.subf %7, %8 : vector<8x256xf32>
    %10 = arith.mulf %9, %9 : vector<8x256xf32>
    %11 = arith.addf %4, %10 : vector<8x256xf32>
    %12 = vector.extract_strided_slice %1 {offsets = [1, 0], sizes = [1, 256], strides = [1, 1]} : vector<4x256xf32> to vector<1x256xf32>
    %13 = vector.extract_strided_slice %2 {offsets = [0, 1], sizes = [8, 1], strides = [1, 1]} : vector<8x4xf32> to vector<8x1xf32>
    %14 = vector.broadcast %12 : vector<1x256xf32> to vector<8x256xf32>
    %15 = vector.broadcast %13 : vector<8x1xf32> to vector<8x256xf32>
    %16 = arith.subf %14, %15 : vector<8x256xf32>
    %17 = arith.mulf %16, %16 : vector<8x256xf32>
    %18 = arith.addf %11, %17 : vector<8x256xf32>
    %19 = vector.extract_strided_slice %1 {offsets = [2, 0], sizes = [1, 256], strides = [1, 1]} : vector<4x256xf32> to vector<1x256xf32>
    %20 = vector.extract_strided_slice %2 {offsets = [0, 2], sizes = [8, 1], strides = [1, 1]} : vector<8x4xf32> to vector<8x1xf32>
    %21 = vector.broadcast %19 : vector<1x256xf32> to vector<8x256xf32>
    %22 = vector.broadcast %20 : vector<8x1xf32> to vector<8x256xf32>
    %23 = arith.subf %21, %22 : vector<8x256xf32>
    %24 = arith.mulf %23, %23 : vector<8x256xf32>
    %25 = arith.addf %18, %24 : vector<8x256xf32>
    %26 = vector.extract_strided_slice %1 {offsets = [3, 0], sizes = [1, 256], strides = [1, 1]} : vector<4x256xf32> to vector<1x256xf32>
    %27 = vector.extract_strided_slice %2 {offsets = [0, 3], sizes = [8, 1], strides = [1, 1]} : vector<8x4xf32> to vector<8x1xf32>
    %28 = vector.broadcast %26 : vector<1x256xf32> to vector<8x256xf32>
    %29 = vector.broadcast %27 : vector<8x1xf32> to vector<8x256xf32>
    %30 = arith.subf %28, %29 : vector<8x256xf32>
    %31 = arith.mulf %30, %30 : vector<8x256xf32>
    %32 = arith.addf %25, %31 : vector<8x256xf32>
    %cst_6 = arith.constant dense<0x7F800000> : vector<256xf32>
    %33 = vector.multi_reduction <minimumf>, %32, %cst_6 [0] : vector<8x256xf32> to vector<256xf32>
    %34 = vector.shape_cast %33 : vector<256xf32> to vector<1x256xf32>
    %c0_i32 = arith.constant 0 : i32
    %35 = vector.broadcast %c0_i32 : i32 to vector<1x256xi32>
    %cst_7 = arith.constant 0.000000e+00 : f32
    %36 = vector.broadcast %cst_7 : f32 to vector<4x256xf32>
    %37 = vector.extract_strided_slice %32 {offsets = [7, 0], sizes = [1, 256], strides = [1, 1]} : vector<8x256xf32> to vector<1x256xf32>
    %38 = arith.cmpf oeq, %37, %34 : vector<1x256xf32>
    %c7_i32 = arith.constant 7 : i32
    %39 = vector.broadcast %c7_i32 : i32 to vector<1x256xi32>
    %40 = arith.select %38, %39, %35 : vector<1x256xi1>, vector<1x256xi32>
    %41 = vector.extract_strided_slice %3 {offsets = [0, 7], sizes = [4, 1], strides = [1, 1]} : vector<4x8xf32> to vector<4x1xf32>
    %42 = vector.shape_cast %38 : vector<1x256xi1> to vector<1x256xi1>
    %43 = vector.broadcast %42 : vector<1x256xi1> to vector<4x256xi1>
    %44 = vector.shape_cast %41 : vector<4x1xf32> to vector<4x1xf32>
    %45 = vector.broadcast %44 : vector<4x1xf32> to vector<4x256xf32>
    %46 = arith.select %43, %45, %36 : vector<4x256xi1>, vector<4x256xf32>
    %47 = vector.extract_strided_slice %32 {offsets = [6, 0], sizes = [1, 256], strides = [1, 1]} : vector<8x256xf32> to vector<1x256xf32>
    %48 = arith.cmpf oeq, %47, %34 : vector<1x256xf32>
    %c6_i32 = arith.constant 6 : i32
    %49 = vector.broadcast %c6_i32 : i32 to vector<1x256xi32>
    %50 = arith.select %48, %49, %40 : vector<1x256xi1>, vector<1x256xi32>
    %51 = vector.extract_strided_slice %3 {offsets = [0, 6], sizes = [4, 1], strides = [1, 1]} : vector<4x8xf32> to vector<4x1xf32>
    %52 = vector.shape_cast %48 : vector<1x256xi1> to vector<1x256xi1>
    %53 = vector.broadcast %52 : vector<1x256xi1> to vector<4x256xi1>
    %54 = vector.shape_cast %51 : vector<4x1xf32> to vector<4x1xf32>
    %55 = vector.broadcast %54 : vector<4x1xf32> to vector<4x256xf32>
    %56 = arith.select %53, %55, %46 : vector<4x256xi1>, vector<4x256xf32>
    %57 = vector.extract_strided_slice %32 {offsets = [5, 0], sizes = [1, 256], strides = [1, 1]} : vector<8x256xf32> to vector<1x256xf32>
    %58 = arith.cmpf oeq, %57, %34 : vector<1x256xf32>
    %c5_i32 = arith.constant 5 : i32
    %59 = vector.broadcast %c5_i32 : i32 to vector<1x256xi32>
    %60 = arith.select %58, %59, %50 : vector<1x256xi1>, vector<1x256xi32>
    %61 = vector.extract_strided_slice %3 {offsets = [0, 5], sizes = [4, 1], strides = [1, 1]} : vector<4x8xf32> to vector<4x1xf32>
    %62 = vector.shape_cast %58 : vector<1x256xi1> to vector<1x256xi1>
    %63 = vector.broadcast %62 : vector<1x256xi1> to vector<4x256xi1>
    %64 = vector.shape_cast %61 : vector<4x1xf32> to vector<4x1xf32>
    %65 = vector.broadcast %64 : vector<4x1xf32> to vector<4x256xf32>
    %66 = arith.select %63, %65, %56 : vector<4x256xi1>, vector<4x256xf32>
    %67 = vector.extract_strided_slice %32 {offsets = [4, 0], sizes = [1, 256], strides = [1, 1]} : vector<8x256xf32> to vector<1x256xf32>
    %68 = arith.cmpf oeq, %67, %34 : vector<1x256xf32>
    %c4_i32 = arith.constant 4 : i32
    %69 = vector.broadcast %c4_i32 : i32 to vector<1x256xi32>
    %70 = arith.select %68, %69, %60 : vector<1x256xi1>, vector<1x256xi32>
    %71 = vector.extract_strided_slice %3 {offsets = [0, 4], sizes = [4, 1], strides = [1, 1]} : vector<4x8xf32> to vector<4x1xf32>
    %72 = vector.shape_cast %68 : vector<1x256xi1> to vector<1x256xi1>
    %73 = vector.broadcast %72 : vector<1x256xi1> to vector<4x256xi1>
    %74 = vector.shape_cast %71 : vector<4x1xf32> to vector<4x1xf32>
    %75 = vector.broadcast %74 : vector<4x1xf32> to vector<4x256xf32>
    %76 = arith.select %73, %75, %66 : vector<4x256xi1>, vector<4x256xf32>
    %77 = vector.extract_strided_slice %32 {offsets = [3, 0], sizes = [1, 256], strides = [1, 1]} : vector<8x256xf32> to vector<1x256xf32>
    %78 = arith.cmpf oeq, %77, %34 : vector<1x256xf32>
    %c3_i32 = arith.constant 3 : i32
    %79 = vector.broadcast %c3_i32 : i32 to vector<1x256xi32>
    %80 = arith.select %78, %79, %70 : vector<1x256xi1>, vector<1x256xi32>
    %81 = vector.extract_strided_slice %3 {offsets = [0, 3], sizes = [4, 1], strides = [1, 1]} : vector<4x8xf32> to vector<4x1xf32>
    %82 = vector.shape_cast %78 : vector<1x256xi1> to vector<1x256xi1>
    %83 = vector.broadcast %82 : vector<1x256xi1> to vector<4x256xi1>
    %84 = vector.shape_cast %81 : vector<4x1xf32> to vector<4x1xf32>
    %85 = vector.broadcast %84 : vector<4x1xf32> to vector<4x256xf32>
    %86 = arith.select %83, %85, %76 : vector<4x256xi1>, vector<4x256xf32>
    %87 = vector.extract_strided_slice %32 {offsets = [2, 0], sizes = [1, 256], strides = [1, 1]} : vector<8x256xf32> to vector<1x256xf32>
    %88 = arith.cmpf oeq, %87, %34 : vector<1x256xf32>
    %c2_i32 = arith.constant 2 : i32
    %89 = vector.broadcast %c2_i32 : i32 to vector<1x256xi32>
    %90 = arith.select %88, %89, %80 : vector<1x256xi1>, vector<1x256xi32>
    %91 = vector.extract_strided_slice %3 {offsets = [0, 2], sizes = [4, 1], strides = [1, 1]} : vector<4x8xf32> to vector<4x1xf32>
    %92 = vector.shape_cast %88 : vector<1x256xi1> to vector<1x256xi1>
    %93 = vector.broadcast %92 : vector<1x256xi1> to vector<4x256xi1>
    %94 = vector.shape_cast %91 : vector<4x1xf32> to vector<4x1xf32>
    %95 = vector.broadcast %94 : vector<4x1xf32> to vector<4x256xf32>
    %96 = arith.select %93, %95, %86 : vector<4x256xi1>, vector<4x256xf32>
    %97 = vector.extract_strided_slice %32 {offsets = [1, 0], sizes = [1, 256], strides = [1, 1]} : vector<8x256xf32> to vector<1x256xf32>
    %98 = arith.cmpf oeq, %97, %34 : vector<1x256xf32>
    %c1_i32 = arith.constant 1 : i32
    %99 = vector.broadcast %c1_i32 : i32 to vector<1x256xi32>
    %100 = arith.select %98, %99, %90 : vector<1x256xi1>, vector<1x256xi32>
    %101 = vector.extract_strided_slice %3 {offsets = [0, 1], sizes = [4, 1], strides = [1, 1]} : vector<4x8xf32> to vector<4x1xf32>
    %102 = vector.shape_cast %98 : vector<1x256xi1> to vector<1x256xi1>
    %103 = vector.broadcast %102 : vector<1x256xi1> to vector<4x256xi1>
    %104 = vector.shape_cast %101 : vector<4x1xf32> to vector<4x1xf32>
    %105 = vector.broadcast %104 : vector<4x1xf32> to vector<4x256xf32>
    %106 = arith.select %103, %105, %96 : vector<4x256xi1>, vector<4x256xf32>
    %107 = vector.extract_strided_slice %32 {offsets = [0, 0], sizes = [1, 256], strides = [1, 1]} : vector<8x256xf32> to vector<1x256xf32>
    %108 = arith.cmpf oeq, %107, %34 : vector<1x256xf32>
    %c0_i32_8 = arith.constant 0 : i32
    %109 = vector.broadcast %c0_i32_8 : i32 to vector<1x256xi32>
    %110 = arith.select %108, %109, %100 : vector<1x256xi1>, vector<1x256xi32>
    %111 = vector.extract_strided_slice %3 {offsets = [0, 0], sizes = [4, 1], strides = [1, 1]} : vector<4x8xf32> to vector<4x1xf32>
    %112 = vector.shape_cast %108 : vector<1x256xi1> to vector<1x256xi1>
    %113 = vector.broadcast %112 : vector<1x256xi1> to vector<4x256xi1>
    %114 = vector.shape_cast %111 : vector<4x1xf32> to vector<4x1xf32>
    %115 = vector.broadcast %114 : vector<4x1xf32> to vector<4x256xf32>
    %116 = arith.select %113, %115, %106 : vector<4x256xi1>, vector<4x256xf32>
    %c0_9 = arith.constant 0 : index
    %c0_10 = arith.constant 0 : index
    %c0_11 = arith.constant 0 : index
    %117 = vector.load %arg6[%c0_9, %c0_10, %c0_11] : memref<1x1x256xi32, #tpu.memory_space<vmem>>, vector<1x1x256xi32>
    %118 = vector.shape_cast %117 : vector<1x1x256xi32> to vector<1x256xi32>
    %119 = vector.shape_cast %110 : vector<1x256xi32> to vector<1x1x256xi32>
    tpu.vector_store %arg6[%c0_9, %c0_10, %c0_11], %119 {strides = array<i32>} : memref<1x1x256xi32, #tpu.memory_space<vmem>>, vector<1x1x256xi32>,
    %c0_12 = arith.constant 0 : index
    %c0_13 = arith.constant 0 : index
    %c0_14 = arith.constant 0 : index
    %120 = vector.load %arg5[%c0_12, %c0_13, %c0_14] : memref<1x4x256xf32, #tpu.memory_space<vmem>>, vector<1x4x256xf32>
    %121 = vector.shape_cast %120 : vector<1x4x256xf32> to vector<4x256xf32>
    %122 = vector.shape_cast %116 : vector<4x256xf32> to vector<1x4x256xf32>
    tpu.vector_store %arg5[%c0_12, %c0_13, %c0_14], %122 {strides = array<i32>} : memref<1x4x256xf32, #tpu.memory_space<vmem>>, vector<1x4x256xf32>,
    %123 = tpu.iota {dimensions = array<i32: 1>} : vector<1x256xi32>
    %c256_i32 = arith.constant 256 : i32
    %124 = arith.muli %arg1, %c256_i32 : i32
    %125 = vector.broadcast %124 : i32 to vector<1x256xi32>
    %126 = arith.addi %123, %125 : vector<1x256xi32>
    %c256_i32_15 = arith.constant 256 : i32
    %127 = vector.broadcast %c256_i32_15 : i32 to vector<1x256xi32>
    %128 = arith.cmpi slt, %126, %127 : vector<1x256xi32>
    %129 = arith.extui %128 : vector<1x256xi1> to vector<1x256xi32>
    %130 = arith.sitofp %129 : vector<1x256xi32> to vector<1x256xf32>
    %131 = arith.subf %116, %1 : vector<4x256xf32>
    %132 = arith.subf %116, %1 : vector<4x256xf32>
    %133 = arith.mulf %131, %132 : vector<4x256xf32>
    %134 = vector.broadcast %130 : vector<1x256xf32> to vector<4x256xf32>
    %135 = arith.mulf %133, %134 : vector<4x256xf32>
    %cst_16 = arith.constant dense<0.000000e+00> : vector<4xf32>
    %136 = vector.multi_reduction <add>, %135, %cst_16 [1] : vector<4x256xf32> to vector<4xf32>
    %137 = vector.shape_cast %136 : vector<4xf32> to vector<4x1xf32>
    %cst_17 = arith.constant dense<0.000000e+00> : vector<1xf32>
    %138 = vector.multi_reduction <add>, %137, %cst_17 [0] : vector<4x1xf32> to vector<1xf32>
    %139 = vector.shape_cast %138 : vector<1xf32> to vector<1x1xf32>
    %cst_18 = arith.constant 0.000000e+00 : f32
    %140 = vector.broadcast %cst_18 : f32 to vector<8x128xf32>
    %141 = vector.broadcast %139 : vector<1x1xf32> to vector<8x128xf32>
    %142 = arith.addf %140, %141 : vector<8x128xf32>
    %c0_19 = arith.constant 0 : index
    %c0_20 = arith.constant 0 : index
    %c0_21 = arith.constant 0 : index
    %143 = vector.load %arg7[%c0_19, %c0_20, %c0_21] : memref<1x8x128xf32, #tpu.memory_space<vmem>>, vector<1x8x128xf32>
    %144 = vector.shape_cast %143 : vector<1x8x128xf32> to vector<8x128xf32>
    %145 = vector.shape_cast %142 : vector<8x128xf32> to vector<1x8x128xf32>
    tpu.vector_store %arg7[%c0_19, %c0_20, %c0_21], %145 {strides = array<i32>} : memref<1x8x128xf32, #tpu.memory_space<vmem>>, vector<1x8x128xf32>,
    return
  }
  func.func @transform_0(%arg0: i32, %arg1: i32) -> (i32, i32, i32) {
    %c0_i32 = arith.constant 0 : i32
    %c0_i32_0 = arith.constant 0 : i32
    return %arg0, %c0_i32, %arg1 : i32, i32, i32
  }
  func.func @transform_1(%arg0: i32, %arg1: i32) -> (i32, i32) {
    %c0_i32 = arith.constant 0 : i32
    %c0_i32_0 = arith.constant 0 : i32
    %c0_i32_1 = arith.constant 0 : i32
    return %c0_i32, %c0_i32_0 : i32, i32
  }
  func.func @transform_2(%arg0: i32, %arg1: i32) -> (i32, i32) {
    %c0_i32 = arith.constant 0 : i32
    %c0_i32_0 = arith.constant 0 : i32
    %c0_i32_1 = arith.constant 0 : i32
    return %c0_i32, %c0_i32_0 : i32, i32
  }
  func.func @transform_3(%arg0: i32, %arg1: i32) -> (i32, i32, i32) {
    %c0_i32 = arith.constant 0 : i32
    %c0_i32_0 = arith.constant 0 : i32
    return %arg0, %c0_i32, %arg1 : i32, i32, i32
  }
  func.func @transform_4(%arg0: i32, %arg1: i32) -> (i32, i32, i32) {
    %c0_i32 = arith.constant 0 : i32
    %c0_i32_0 = arith.constant 0 : i32
    return %arg0, %c0_i32, %arg1 : i32, i32, i32
  }
  func.func @transform_5(%arg0: i32, %arg1: i32) -> (i32, i32, i32) {
    %c0_i32 = arith.constant 0 : i32
    %c0_i32_0 = arith.constant 0 : i32
    return %arg0, %arg1, %c0_i32 : i32, i32, i32
  }
}

</mosaic_0001>

<llo_original>
// kernel: tpu_custom_call.1
$region0: #{tpu_custom_call.1}
  #allocation0 [shape = 'u32[]', space=smem, size = 0x4, offset = 0x4, fixed_abs, tag = 'smem constant byte address 0x4 - core index']
  #allocation1 [shape = 'u32[72,128]{1,0:T(1,128)}', space=vmem, size = 0x9000, scoped, tag = 'internal scratch']
  %s0 = inlined_call_operand.hbm [shape: f32[2,4,256], index: 0, kind: input, shape index: {}]
  %s1 = inlined_call_operand.vmem [shape: f32[8,4], index: 1, kind: input, shape index: {}]
  %s2 = inlined_call_operand.vmem [shape: f32[4,8], index: 2, kind: input, shape index: {}]
  %s3 = inlined_call_operand.hbm [shape: f32[2,4,256], index: 3, kind: output, shape index: {0}]
  %s4 = inlined_call_operand.hbm [shape: s32[2,1,256], index: 4, kind: output, shape index: {1}]
  %s5 = inlined_call_operand.hbm [shape: f32[2,8,128], index: 5, kind: output, shape index: {2}]
  %6 = xla_tuple %s3, %s4, %s5
  %s7 = sld [smem:[#allocation0]]
  $region65: #{tpu_custom_call.1} parent=0
    _
  %s9 = ssub.s32 1, %s7
  %s10 = scalar_select 0, %s9, %s7
  $region1: #{tpu_custom_call.1} parent=0
    #allocation2 [shape = 'u8[8192]{0}', space=vmem, size = 0x2000, scoped, tag = 'input window, operand 0']
    #allocation3 [shape = 's32[2]{0}', space=sflag, size = 0x8, scoped, tag = 'scoped memory for tpu_custom_call.1']
    #allocation4 [shape = 's32[2]{0}', space=sflag, size = 0x8, scoped, tag = 'scoped memory for tpu_custom_call.1']
    #allocation5 [shape = 'u8[8192]{0}', space=vmem, size = 0x2000, scoped, tag = 'output window, operand 0']
    #allocation6 [shape = 'u8[2048]{0}', space=vmem, size = 0x800, scoped, tag = 'output window, operand 1']
    #allocation7 [shape = 's32[2]{0}', space=sflag, size = 0x8, scoped, tag = 'scoped memory for tpu_custom_call.1']
    #allocation8 [shape = 'u8[8192]{0}', space=vmem, size = 0x2000, scoped, tag = 'output window, operand 2']
    %11 = vsyncpa [#allocation3], 0
    %s12 = scalar_lea.sflag [#allocation3], 1
    %13 = vsyncpa %s12, 0
    %14 = vsyncpa [#allocation4], 0
    %s15 = scalar_lea.sflag [#allocation4], 1
    %16 = vsyncpa %s15, 0
    %17 = vsyncpa [#allocation7], 0
    %s18 = scalar_lea.sflag [#allocation7], 1
    %19 = vsyncpa %s18, 0
    loop: start=0, step=1, limit=4
    $region2: #{tpu_custom_call.1} parent=1 // loop_pre_header
      _
    $region3: #{tpu_custom_call.1} parent=1 // loop_header
      %s21 = sphi 0, %s25
      %p22 = scmp.ge.s32.totalorder %s21, 4
      %s28 = sphi 0, %s40
      %s29 = sphi 0, %s36
      %s30 = sphi 0, %s28
      %s31 = sphi 0, %s29
      %s32 = sphi 0, %s30
      %s33 = sphi 0, %s31
      %s45 = sphi 0, %s47
      %s48 = sphi 0, %s45
      %s49 = sphi 0, %s48
      %s65 = sphi 0, %s49
      %s69 = sphi 0, %s69
      %s71 = sphi 0, %s69
      %s72 = sphi 0, %s71
      %s86 = sphi 0, %s72
      %s90 = sphi 0, %s90
      %s92 = sphi 0, %s90
      %s93 = sphi 0, %s92
      %s107 = sphi 0, %s93
      %s115 = sphi 0, %s117
      %s118 = sphi 0, %s115
      %s119 = sphi 0, %s118
      %s135 = sphi 0, %s119
      %s143 = sphi 0, %s145
      %s146 = sphi 0, %s143
      %s147 = sphi 0, %s146
      %s163 = sphi 0, %s147
      %s171 = sphi 0, %s173
      %s174 = sphi 0, %s171
      %s175 = sphi 0, %s174
      %s191 = sphi 0, %s175
    $region4: #{tpu_custom_call.1} parent=1 // loop_header_branch
      %24 = sbr.rel (%p22) target = $region8
    $region5: #{tpu_custom_call.1} parent=1 // loop_body
      %s26 = ssub.s32 %s21, 1
      %s27 = ssub.s32 %s21, 2
      %s34 = sadd.s32 1, %s29
      %p35 = scmp.ge.s32.totalorder %s34, 1
      %s36 = scalar_select %p35, 0, %s34
      %s37 = sadd.s32 1, %s28
      %s38 = scalar_select %p35, %s37, %s28
      %p39 = scmp.ge.s32.totalorder %s38, 2
      %s40 = scalar_select %p39, 0, %s38
      %s41 = ssub.s32 %s28, %s40
      %s42 = ssub.s32 %s29, %s36
      %s43 = sor.u32 %s41, %s42
      %p44 = scmp.eq.s32.totalorder %s43, 0
      %s46 = sadd.s32 %s45, 1
      %s47 = scalar_select %p44, %s45, %s46
      %p50 = pneg %p44
      %p51 = scmp.eq.s32.totalorder %s21, 1
      %p52 = por %p50, %p51
      %p53 = scmp.ne.s32.totalorder %s45, %s48
      %p54 = scmp.eq.s32.totalorder %s21, 0
      %p55 = por %p53, %p54
      %p56 = scmp.ne.s32.totalorder %s45, %s48
      %p57 = scmp.eq.s32.totalorder %s26, 1
      %p58 = por %p56, %p57
      %p59 = scmp.ne.s32.totalorder %s48, %s49
      %p60 = scmp.eq.s32.totalorder %s26, 0
      %p61 = por %p59, %p60
      %p62 = scmp.ne.s32.totalorder %s48, %s49
      %p63 = scmp.eq.s32.totalorder %s27, 1
      %p64 = por %p62, %p63
      %p66 = scmp.ne.s32.totalorder %s49, %s65
      %p67 = scmp.eq.s32.totalorder %s27, 0
      %p68 = por %p66, %p67
      %s70 = sadd.s32 %s69, 1
      %p73 = scmp.eq.s32.totalorder %s21, 1
      %p74 = scmp.ne.s32.totalorder %s69, %s71
      %p75 = scmp.eq.s32.totalorder %s21, 0
      %p76 = por %p74, %p75
      %p77 = scmp.ne.s32.totalorder %s69, %s71
      %p78 = scmp.eq.s32.totalorder %s26, 1
      %p79 = por %p77, %p78
      %p80 = scmp.ne.s32.totalorder %s71, %s72
      %p81 = scmp.eq.s32.totalorder %s26, 0
      %p82 = por %p80, %p81
      %p83 = scmp.ne.s32.totalorder %s71, %s72
      %p84 = scmp.eq.s32.totalorder %s27, 1
      %p85 = por %p83, %p84
      %p87 = scmp.ne.s32.totalorder %s72, %s86
      %p88 = scmp.eq.s32.totalorder %s27, 0
      %p89 = por %p87, %p88
      %s91 = sadd.s32 %s90, 1
      %p94 = scmp.eq.s32.totalorder %s21, 1
      %p95 = scmp.ne.s32.totalorder %s90, %s92
      %p96 = scmp.eq.s32.totalorder %s21, 0
      %p97 = por %p95, %p96
      %p98 = scmp.ne.s32.totalorder %s90, %s92
      %p99 = scmp.eq.s32.totalorder %s26, 1
      %p100 = por %p98, %p99
      %p101 = scmp.ne.s32.totalorder %s92, %s93
      %p102 = scmp.eq.s32.totalorder %s26, 0
      %p103 = por %p101, %p102
      %p104 = scmp.ne.s32.totalorder %s92, %s93
      %p105 = scmp.eq.s32.totalorder %s27, 1
      %p106 = por %p104, %p105
      %p108 = scmp.ne.s32.totalorder %s93, %s107
      %p109 = scmp.eq.s32.totalorder %s27, 0
      %p110 = por %p108, %p109
      %s111 = ssub.s32 %s28, %s40
      %s112 = ssub.s32 %s29, %s36
      %s113 = sor.u32 %s111, %s112
      %p114 = scmp.eq.s32.totalorder %s113, 0
      %s116 = sadd.s32 %s115, 1
      %s117 = scalar_select %p114, %s115, %s116
      %p120 = pneg %p114
      %p121 = scmp.eq.s32.totalorder %s21, 1
      %p122 = por %p120, %p121
      %p123 = scmp.ne.s32.totalorder %s115, %s118
      %p124 = scmp.eq.s32.totalorder %s21, 0
      %p125 = por %p123, %p124
      %p126 = scmp.ne.s32.totalorder %s115, %s118
      %p127 = scmp.eq.s32.totalorder %s26, 1
      %p128 = por %p126, %p127
      %p129 = scmp.ne.s32.totalorder %s118, %s119
      %p130 = scmp.eq.s32.totalorder %s26, 0
      %p131 = por %p129, %p130
      %p132 = scmp.ne.s32.totalorder %s118, %s119
      %p133 = scmp.eq.s32.totalorder %s27, 1
      %p134 = por %p132, %p133
      %p136 = scmp.ne.s32.totalorder %s119, %s135
      %p137 = scmp.eq.s32.totalorder %s27, 0
      %p138 = por %p136, %p137
      %s139 = ssub.s32 %s28, %s40
      %s140 = ssub.s32 %s29, %s36
      %s141 = sor.u32 %s139, %s140
      %p142 = scmp.eq.s32.totalorder %s141, 0
      %s144 = sadd.s32 %s143, 1
      %s145 = scalar_select %p142, %s143, %s144
      %p148 = pneg %p142
      %p149 = scmp.eq.s32.totalorder %s21, 1
      %p150 = por %p148, %p149
      %p151 = scmp.ne.s32.totalorder %s143, %s146
      %p152 = scmp.eq.s32.totalorder %s21, 0
      %p153 = por %p151, %p152
      %p154 = scmp.ne.s32.totalorder %s143, %s146
      %p155 = scmp.eq.s32.totalorder %s26, 1
      %p156 = por %p154, %p155
      %p157 = scmp.ne.s32.totalorder %s146, %s147
      %p158 = scmp.eq.s32.totalorder %s26, 0
      %p159 = por %p157, %p158
      %p160 = scmp.ne.s32.totalorder %s146, %s147
      %p161 = scmp.eq.s32.totalorder %s27, 1
      %p162 = por %p160, %p161
      %p164 = scmp.ne.s32.totalorder %s147, %s163
      %p165 = scmp.eq.s32.totalorder %s27, 0
      %p166 = por %p164, %p165
      %s167 = ssub.s32 %s28, %s40
      %s168 = ssub.s32 %s29, %s36
      %s169 = sor.u32 %s167, %s168
      %p170 = scmp.eq.s32.totalorder %s169, 0
      %s172 = sadd.s32 %s171, 1
      %s173 = scalar_select %p170, %s171, %s172
      %p176 = pneg %p170
      %p177 = scmp.eq.s32.totalorder %s21, 1
      %p178 = por %p176, %p177
      %p179 = scmp.ne.s32.totalorder %s171, %s174
      %p180 = scmp.eq.s32.totalorder %s21, 0
      %p181 = por %p179, %p180
      %p182 = scmp.ne.s32.totalorder %s171, %s174
      %p183 = scmp.eq.s32.totalorder %s26, 1
      %p184 = por %p182, %p183
      %p185 = scmp.ne.s32.totalorder %s174, %s175
      %p186 = scmp.eq.s32.totalorder %s26, 0
      %p187 = por %p185, %p186
      %p188 = scmp.ne.s32.totalorder %s174, %s175
      %p189 = scmp.eq.s32.totalorder %s27, 1
      %p190 = por %p188, %p189
      %p192 = scmp.ne.s32.totalorder %s175, %s191
      %p193 = scmp.eq.s32.totalorder %s27, 0
      %p194 = por %p192, %p193
      %p195 = scmp.le.s32.totalorder 1, %s21
      %p196 = scmp.lt.s32.totalorder %s21, 3
      %p197 = pnand %p195, %p196
      %p198 = pneg %p197
      // Predicated region
      $region9: #{tpu_custom_call.1} parent=5 // pred_check
        _
      $region10: #{tpu_custom_call.1} parent=5 // pred_check_branch
        %200 = sbr.rel (%p197) target = $region12
      $region11: #{tpu_custom_call.1} parent=5 // pred_region
        %s201 = ssub.s32 %s21, 1
        // Predicated region
        $region13: #{tpu_custom_call.1} parent=11 // pred_check
          %p202 = pneg %p82
        $region14: #{tpu_custom_call.1} parent=11 // pred_check_branch
          %204 = sbr.rel (%p202) target = $region16
        $region15: #{tpu_custom_call.1} parent=11 // pred_region
          _
        $region16: #{tpu_custom_call.1} parent=11 // pred_fallthru
          _
        // Predicated region
        $region17: #{tpu_custom_call.1} parent=11 // pred_check
          %p205 = pneg %p103
        $region18: #{tpu_custom_call.1} parent=11 // pred_check_branch
          %207 = sbr.rel (%p205) target = $region20
        $region19: #{tpu_custom_call.1} parent=11 // pred_region
          _
        $region20: #{tpu_custom_call.1} parent=11 // pred_fallthru
          _
      $region12: #{tpu_custom_call.1} parent=5 // pred_fallthru
        _
      %p208 = scmp.lt.s32.totalorder %s21, 2
      // Predicated region
      $region21: #{tpu_custom_call.1} parent=5 // pred_check
        %p209 = pneg %p208
      $region22: #{tpu_custom_call.1} parent=5 // pred_check_branch
        %211 = sbr.rel (%p209) target = $region24
      $region23: #{tpu_custom_call.1} parent=5 // pred_region
        // Predicated region
        $region25: #{tpu_custom_call.1} parent=23 // pred_check
          %p212 = pneg %p55
        $region26: #{tpu_custom_call.1} parent=23 // pred_check_branch
          %214 = sbr.rel (%p212) target = $region28
        $region27: #{tpu_custom_call.1} parent=23 // pred_region
          %s215 = sand.u32 %s45, 1
          %s216 = scalar_lea.sflag [#allocation3], %s215
          %s217 = sand.u32 %s45, 1
          %s218 = smul.addr %s217, 8
          %s219 = scalar_lea.vmem [#allocation2], %s218
          %s220 = smul.u32 2, %s29
          %222 = vsyncadd %s216, 0
          %s223 = smul.addr %s28, 2
          %s224 = sadd.s32 %s220, %s223
          %s225 = smul.addr %s224, 4
          %s226 = scalar_lea.hbm %s0, %s225
          %s228 = sshll.u32 %s226, 4
          %s229 = int_to_ptr.hbm [resolvable:$true] %s228
          %s230 = sshll.u32 %s219, 4
          %s231 = int_to_ptr.vmem [resolvable:$true] %s230
          %233 = dma.hbm_to_vmem [thread:$0]  %s229, 128, %s231, %s216
        $region28: #{tpu_custom_call.1} parent=23 // pred_fallthru
          _
      $region24: #{tpu_custom_call.1} parent=5 // pred_fallthru
        _
      %p234 = scmp.le.s32.totalorder 1, %s21
      %p235 = scmp.lt.s32.totalorder %s21, 3
      %p236 = pnand %p234, %p235
      %p237 = pneg %p236
      // Predicated region
      $region29: #{tpu_custom_call.1} parent=5 // pred_check
        _
      $region30: #{tpu_custom_call.1} parent=5 // pred_check_branch
        %239 = sbr.rel (%p236) target = $region32
      $region31: #{tpu_custom_call.1} parent=5 // pred_region
        %s240 = ssub.s32 %s21, 1
        %s241 = sand.u32 %s48, 1
        %s242 = scalar_lea.sflag [#allocation3], %s241
        %s243 = sand.u32 %s48, 1
        %s244 = smul.addr %s243, 8
        %s245 = scalar_lea.vmem [#allocation2], %s244
        // Predicated region
        $region33: #{tpu_custom_call.1} parent=31 // pred_check
          %p246 = pneg %p61
        $region34: #{tpu_custom_call.1} parent=31 // pred_check_branch
          %248 = sbr.rel (%p246) target = $region36
        $region35: #{tpu_custom_call.1} parent=31 // pred_region
          %250 = dma.done %s242, 128
        $region36: #{tpu_custom_call.1} parent=31 // pred_fallthru
          _
        %s251 = sand.u32 %s48, 1
        %s252 = scalar_lea.sflag [#allocation3], %s251
        %s253 = sand.u32 %s48, 1
        %s254 = smul.addr %s253, 8
        %s255 = scalar_lea.vmem [#allocation2], %s254
        %p256 = pneg %p61
        %p257 = pneg %p58
        %p258 = pneg %p82
        %p259 = pneg %p79
        %p260 = pneg %p103
        %p261 = pneg %p100
        %p262 = pneg %p131
        %p263 = pneg %p128
        %s264 = sand.u32 %s118, 1
        %s265 = scalar_lea.sflag [#allocation4], %s264
        %s266 = sand.u32 %s118, 1
        %s267 = smul.addr %s266, 8
        %s268 = scalar_lea.vmem [#allocation5], %s267
        %p269 = pneg %p159
        %p270 = pneg %p156
        %s271 = sand.u32 %s26, 1
        %s272 = scalar_lea.sflag [#allocation7], %s271
        %s273 = sand.u32 %s146, 1
        %s274 = smul.addr %s273, 2
        %s275 = scalar_lea.vmem [#allocation6], %s274
        %p276 = pneg %p187
        %p277 = pneg %p184
        %s278 = sand.u32 %s26, 1
        %s279 = scalar_lea.sflag [#allocation7], %s278
        %s280 = sand.u32 %s174, 1
        %s281 = smul.addr %s280, 8
        %s282 = scalar_lea.vmem [#allocation8], %s281
        %s283 = smul.u32 2, %s31
        %s284 = smul.u32 2, %s31
        %s285 = smul.u32 2, %s31
        %v286 = vld [vmem:[%s245] sm:$0xff]
        %v287 = vld [vmem:[%s1] sm:$0xff]
        %v288 = vld [vmem:[%s2] sm:$0xf]
        %v290 = vperm.slane %v286, 0
        %v291 = vperm.slane %v286, 4
        %v294 = vperm.slane %v290, 0
        %v295 = vperm.slane %v291, 0
        %297 = vset.pattern.permute.xlu0 0
        %298 = vperm.xlu0 %297, %v287
        %v299 = vpop.permute.xlu0 %298
        %v301 = vsub.f32 %v294, %v299
        %v302 = vsub.f32 %v295, %v299
        %v303 = vmul.f32 %v301, %v301
        %v304 = vmul.f32 %v302, %v302
        %v305 = vadd.f32 %v303, 0.0
        %v306 = vadd.f32 %v304, 0.0
        %v307 = vperm.slane %v286, 1
        %v308 = vperm.slane %v286, 5
        %v311 = vperm.slane %v307, 1
        %v312 = vperm.slane %v308, 1
        %313 = vset.pattern.permute.xlu0 1
        %314 = vperm.xlu0 %313, %v287
        %v315 = vpop.permute.xlu0 %314
        %v317 = vsub.f32 %v311, %v315
        %v318 = vsub.f32 %v312, %v315
        %v319 = vmul.f32 %v317, %v317
        %v320 = vmul.f32 %v318, %v318
        %v321 = vadd.f32 %v305, %v319
        %v322 = vadd.f32 %v306, %v320
        %v323 = vperm.slane %v286, 2
        %v324 = vperm.slane %v286, 6
        %v327 = vperm.slane %v323, 2
        %v328 = vperm.slane %v324, 2
        %329 = vset.pattern.permute.xlu0 2
        %330 = vperm.xlu0 %329, %v287
        %v331 = vpop.permute.xlu0 %330
        %v333 = vsub.f32 %v327, %v331
        %v334 = vsub.f32 %v328, %v331
        %v335 = vmul.f32 %v333, %v333
        %v336 = vmul.f32 %v334, %v334
        %v337 = vadd.f32 %v321, %v335
        %v338 = vadd.f32 %v322, %v336
        %v339 = vperm.slane %v286, 3
        %v340 = vperm.slane %v286, 7
        %v343 = vperm.slane %v339, 3
        %v344 = vperm.slane %v340, 3
        %345 = vset.pattern.permute.xlu0 3
        %346 = vperm.xlu0 %345, %v287
        %v347 = vpop.permute.xlu0 %346
        %v349 = vsub.f32 %v343, %v347
        %v350 = vsub.f32 %v344, %v347
        %v351 = vmul.f32 %v349, %v349
        %v352 = vmul.f32 %v350, %v350
        %v353 = vadd.f32 %v337, %v351
        %v354 = vadd.f32 %v338, %v352
        %v355 = vrot.slane %v353, 4
        %v356 = vmin.f32 %v353, %v355
        %v357 = vrot.slane %v356, 2
        %v358 = vmin.f32 %v356, %v357
        %v359 = vrot.slane %v358, 1
        %v360 = vmin.f32 %v358, %v359
        %v361 = vrot.slane %v354, 4
        %v362 = vmin.f32 %v354, %v361
        %v363 = vrot.slane %v362, 2
        %v364 = vmin.f32 %v362, %v363
        %v365 = vrot.slane %v364, 1
        %v366 = vmin.f32 %v364, %v365
        %vm367 = vcmp.eq.f32.partialorder %v353, %v360
        %vm368 = vcmp.eq.f32.partialorder %v354, %v366
        %v369 = vsel %vm367, 7, 0
        %v370 = vsel %vm368, 7, 0
        %v371 = vsel %vm367, 1, 0
        %v372 = vsel %vm368, 1, 0
        %v373 = vperm.slane %v371, 7
        %v374 = vperm.slane %v372, 7
        %vm375 = vcmp.eq.s32.totalorder %v373, 1
        %vm376 = vcmp.eq.s32.totalorder %v374, 1
        %378 = vset.pattern.permute.xlu0 7
        %379 = vperm.xlu0 %378, %v288
        %v380 = vpop.permute.xlu0 %379
        %v382 = vsel %vm375, %v380, 0.0
        %v383 = vsel %vm376, %v380, 0.0
        %v384 = vrot.slane %v369, 1
        %v385 = vrot.slane %v370, 1
        %v386 = vsel %vm367, 6, %v384
        %v387 = vsel %vm368, 6, %v385
        %v388 = vperm.slane %v371, 6
        %v389 = vperm.slane %v372, 6
        %vm390 = vcmp.eq.s32.totalorder %v388, 1
        %vm391 = vcmp.eq.s32.totalorder %v389, 1
        %392 = vset.pattern.permute.xlu0 6
        %393 = vperm.xlu0 %392, %v288
        %v394 = vpop.permute.xlu0 %393
        %v396 = vsel %vm390, %v394, %v382
        %v397 = vsel %vm391, %v394, %v383
        %v398 = vrot.slane %v386, 1
        %v399 = vrot.slane %v387, 1
        %v400 = vsel %vm367, 5, %v398
        %v401 = vsel %vm368, 5, %v399
        %v402 = vperm.slane %v371, 5
        %v403 = vperm.slane %v372, 5
        %vm404 = vcmp.eq.s32.totalorder %v402, 1
        %vm405 = vcmp.eq.s32.totalorder %v403, 1
        %406 = vset.pattern.permute.xlu0 5
        %407 = vperm.xlu0 %406, %v288
        %v408 = vpop.permute.xlu0 %407
        %v410 = vsel %vm404, %v408, %v396
        %v411 = vsel %vm405, %v408, %v397
        %v412 = vrot.slane %v400, 1
        %v413 = vrot.slane %v401, 1
        %v414 = vsel %vm367, 4, %v412
        %v415 = vsel %vm368, 4, %v413
        %v416 = vperm.slane %v371, 4
        %v417 = vperm.slane %v372, 4
        %vm418 = vcmp.eq.s32.totalorder %v416, 1
        %vm419 = vcmp.eq.s32.totalorder %v417, 1
        %420 = vset.pattern.permute.xlu0 4
        %421 = vperm.xlu0 %420, %v288
        %v422 = vpop.permute.xlu0 %421
        %v424 = vsel %vm418, %v422, %v410
        %v425 = vsel %vm419, %v422, %v411
        %v426 = vrot.slane %v414, 1
        %v427 = vrot.slane %v415, 1
        %v428 = vsel %vm367, 3, %v426
        %v429 = vsel %vm368, 3, %v427
        %v430 = vperm.slane %v371, 3
        %v431 = vperm.slane %v372, 3
        %vm432 = vcmp.eq.s32.totalorder %v430, 1
        %vm433 = vcmp.eq.s32.totalorder %v431, 1
        %434 = vset.pattern.permute.xlu0 3
        %435 = vperm.xlu0 %434, %v288
        %v436 = vpop.permute.xlu0 %435
        %v438 = vsel %vm432, %v436, %v424
        %v439 = vsel %vm433, %v436, %v425
        %v440 = vrot.slane %v428, 1
        %v441 = vrot.slane %v429, 1
        %v442 = vsel %vm367, 2, %v440
        %v443 = vsel %vm368, 2, %v441
        %v444 = vperm.slane %v371, 2
        %v445 = vperm.slane %v372, 2
        %vm446 = vcmp.eq.s32.totalorder %v444, 1
        %vm447 = vcmp.eq.s32.totalorder %v445, 1
        %448 = vset.pattern.permute.xlu0 2
        %449 = vperm.xlu0 %448, %v288
        %v450 = vpop.permute.xlu0 %449
        %v452 = vsel %vm446, %v450, %v438
        %v453 = vsel %vm447, %v450, %v439
        %v454 = vrot.slane %v442, 1
        %v455 = vrot.slane %v443, 1
        %v456 = vsel %vm367, 1, %v454
        %v457 = vsel %vm368, 1, %v455
        %v458 = vperm.slane %v371, 1
        %v459 = vperm.slane %v372, 1
        %vm460 = vcmp.eq.s32.totalorder %v458, 1
        %vm461 = vcmp.eq.s32.totalorder %v459, 1
        %462 = vset.pattern.permute.xlu0 1
        %463 = vperm.xlu0 %462, %v288
        %v464 = vpop.permute.xlu0 %463
        %v466 = vsel %vm460, %v464, %v452
        %v467 = vsel %vm461, %v464, %v453
        %v468 = vrot.slane %v456, 1
        %v469 = vrot.slane %v457, 1
        %v470 = vsel %vm367, 0, %v468
        %v471 = vsel %vm368, 0, %v469
        %v472 = vperm.slane %v371, 0
        %v473 = vperm.slane %v372, 0
        %vm474 = vcmp.eq.s32.totalorder %v472, 1
        %vm475 = vcmp.eq.s32.totalorder %v473, 1
        %476 = vset.pattern.permute.xlu0 0
        %477 = vperm.xlu0 %476, %v288
        %v478 = vpop.permute.xlu0 %477
        %v480 = vsel %vm474, %v478, %v466
        %v481 = vsel %vm475, %v478, %v467
        %v482 = vrot.slane %v471, 7
        %vm483 = vcmask 1040384
        %v484 = vsel %vm483, %v470, %v482
        %v485 = vlaneseq
        %vm486 = vcmp.ge.s32.totalorder %v485, 0
        %vm487 = vcmp.lt.s32.totalorder %v485, 256
        %vm488 = vmand %vm486, %vm487
        %489 = vst.msk [vmem:[%s275] sm:$0x3] %vm488, %v484
        %v492 = vrot.slane %v481, 4
        %vm493 = vcmask 1043456
        %v494 = vsel %vm493, %v480, %v492
        %496 = vst [vmem:[%s268] sm:$0xff] %v494
        %v497 = vlaneseq
        %v498 = vand.u32 %v497, 127
        %v499 = vadd.s32 %v498, 128
        %s500 = smul.u32 %s31, 256
        %v501 = vstv %s500
        %v502 = vadd.s32 %v498, %v501
        %v503 = vadd.s32 %v499, %v501
        %vm504 = vcmp.lt.s32.totalorder %v502, 256
        %vm505 = vcmp.lt.s32.totalorder %v503, 256
        %v506 = vsel %vm504, 1, 0
        %v507 = vsel %vm505, 1, 0
        %v508 = vcvt.s32.f32 %v506
        %v509 = vcvt.s32.f32 %v507
        %510 = vst [vmem:[#allocation1] ss:$2 sm:$0xff] %v286
        %v511 = vld.sshfl [vmem:[#allocation1] sm:$0xff pattern:$0x75316420]
        %v512 = vld.sshfl [vmem:[#allocation1 + $0x8] sm:$0xff pattern:$0x75316420]
        %v515 = vsub.f32 %v480, %v511
        %v516 = vsub.f32 %v481, %v512
        %v517 = vmul.f32 %v515, %v515
        %v518 = vmul.f32 %v516, %v516
        %v519 = vmul.f32 %v517, %v508
        %v520 = vmul.f32 %v518, %v509
        %v521 = vsel %vm493, %v519, 0.0
        %v522 = vsel %vm493, %v520, 0.0
        %v523 = vadd.f32 %v521, %v522
        %524 = vadd.xlane.f32.xlu0 %v523
        %v525 = vpop.xlane.xlu0 %524
        %v526 = vsel %vm493, %v525, 0.0
        %v527 = vrot.slane %v526, 4
        %v528 = vadd.f32 %v526, %v527
        %v529 = vrot.slane %v528, 2
        %v530 = vadd.f32 %v528, %v529
        %v531 = vrot.slane %v530, 1
        %v532 = vadd.f32 %v530, %v531
        %v533 = vadd.f32 %v532, 0.0
        %534 = vst [vmem:[%s282] sm:$0xff] %v533
        %s535 = sand.u32 %s118, 1
        %s536 = scalar_lea.sflag [#allocation4], %s535
        %s537 = sand.u32 %s118, 1
        %s538 = smul.addr %s537, 8
        %s539 = scalar_lea.vmem [#allocation5], %s538
        %s540 = sand.u32 %s26, 1
        %s541 = scalar_lea.sflag [#allocation7], %s540
        %s542 = sand.u32 %s146, 1
        %s543 = smul.addr %s542, 2
        %s544 = scalar_lea.vmem [#allocation6], %s543
        %s545 = sand.u32 %s26, 1
        %s546 = scalar_lea.sflag [#allocation7], %s545
        %s547 = sand.u32 %s174, 1
        %s548 = smul.addr %s547, 8
        %s549 = scalar_lea.vmem [#allocation8], %s548
        // Predicated region
        $region37: #{tpu_custom_call.1} parent=31 // pred_check
          %p550 = pneg %p128
        $region38: #{tpu_custom_call.1} parent=31 // pred_check_branch
          %552 = sbr.rel (%p550) target = $region40
        $region39: #{tpu_custom_call.1} parent=31 // pred_region
          %s553 = smul.u32 2, %s31
          %555 = vsyncadd %s536, 0
          %s556 = smul.addr %s30, 2
          %s557 = sadd.s32 %s553, %s556
          %s558 = smul.addr %s557, 4
          %s559 = scalar_lea.hbm %s3, %s558
          %s561 = sshll.u32 %s539, 4
          %s562 = int_to_ptr.vmem [resolvable:$true] %s561
          %s563 = sshll.u32 %s559, 4
          %s564 = int_to_ptr.hbm [resolvable:$true] %s563
          %566 = dma.vmem_to_hbm [thread:$0]  %s562, 128, %s564, %s536
        $region40: #{tpu_custom_call.1} parent=31 // pred_fallthru
          _
        // Predicated region
        $region41: #{tpu_custom_call.1} parent=31 // pred_check
          %p567 = pneg %p156
        $region42: #{tpu_custom_call.1} parent=31 // pred_check_branch
          %569 = sbr.rel (%p567) target = $region44
        $region43: #{tpu_custom_call.1} parent=31 // pred_region
          %s570 = smul.u32 2, %s31
          %572 = vsyncadd %s541, 0
          %s573 = smul.addr %s30, 2
          %s574 = sadd.s32 %s570, %s573
          %s575 = scalar_lea.hbm %s4, %s574
          %s577 = sshll.u32 %s544, 4
          %s578 = int_to_ptr.vmem [resolvable:$true] %s577
          %s579 = sshll.u32 %s575, 4
          %s580 = int_to_ptr.hbm [resolvable:$true] %s579
          %582 = dma.vmem_to_hbm [thread:$0]  %s578, 32, %s580, %s541
        $region44: #{tpu_custom_call.1} parent=31 // pred_fallthru
          _
        // Predicated region
        $region45: #{tpu_custom_call.1} parent=31 // pred_check
          %p583 = pneg %p184
        $region46: #{tpu_custom_call.1} parent=31 // pred_check_branch
          %585 = sbr.rel (%p583) target = $region48
        $region47: #{tpu_custom_call.1} parent=31 // pred_region
          %587 = vsyncadd %s546, 0
          %s588 = sadd.s32 %s31, %s30
          %s589 = smul.addr %s588, 8
          %s590 = scalar_lea.hbm %s5, %s589
          %s592 = sshll.u32 %s549, 4
          %s593 = int_to_ptr.vmem [resolvable:$true] %s592
          %s594 = sshll.u32 %s590, 4
          %s595 = int_to_ptr.hbm [resolvable:$true] %s594
          %597 = dma.vmem_to_hbm [thread:$0]  %s593, 128, %s595, %s546
        $region48: #{tpu_custom_call.1} parent=31 // pred_fallthru
          _
      $region32: #{tpu_custom_call.1} parent=5 // pred_fallthru
        _
      %p598 = scmp.le.s32.totalorder 2, %s21
      // Predicated region
      $region49: #{tpu_custom_call.1} parent=5 // pred_check
        %p599 = pneg %p598
      $region50: #{tpu_custom_call.1} parent=5 // pred_check_branch
        %601 = sbr.rel (%p599) target = $region52
      $region51: #{tpu_custom_call.1} parent=5 // pred_region
        %s602 = ssub.s32 %s21, 2
        // Predicated region
        $region53: #{tpu_custom_call.1} parent=51 // pred_check
          %p603 = pneg %p134
        $region54: #{tpu_custom_call.1} parent=51 // pred_check_branch
          %605 = sbr.rel (%p603) target = $region56
        $region55: #{tpu_custom_call.1} parent=51 // pred_region
          %s606 = sand.u32 %s119, 1
          %s607 = scalar_lea.sflag [#allocation4], %s606
          %s608 = sand.u32 %s119, 1
          %s609 = smul.addr %s608, 8
          %s610 = scalar_lea.vmem [#allocation5], %s609
          %612 = dma.done %s607, 128
        $region56: #{tpu_custom_call.1} parent=51 // pred_fallthru
          _
        // Predicated region
        $region57: #{tpu_custom_call.1} parent=51 // pred_check
          %p613 = pneg %p162
        $region58: #{tpu_custom_call.1} parent=51 // pred_check_branch
          %615 = sbr.rel (%p613) target = $region60
        $region59: #{tpu_custom_call.1} parent=51 // pred_region
          %s616 = sand.u32 %s27, 1
          %s617 = scalar_lea.sflag [#allocation7], %s616
          %s618 = sand.u32 %s147, 1
          %s619 = smul.addr %s618, 2
          %s620 = scalar_lea.vmem [#allocation6], %s619
          %622 = dma.done %s617, 32
        $region60: #{tpu_custom_call.1} parent=51 // pred_fallthru
          _
        // Predicated region
        $region61: #{tpu_custom_call.1} parent=51 // pred_check
          %p623 = pneg %p190
        $region62: #{tpu_custom_call.1} parent=51 // pred_check_branch
          %625 = sbr.rel (%p623) target = $region64
        $region63: #{tpu_custom_call.1} parent=51 // pred_region
          %s626 = sand.u32 %s27, 1
          %s627 = scalar_lea.sflag [#allocation7], %s626
          %s628 = sand.u32 %s175, 1
          %s629 = smul.addr %s628, 8
          %s630 = scalar_lea.vmem [#allocation8], %s629
          %632 = dma.done %s627, 128
        $region64: #{tpu_custom_call.1} parent=51 // pred_fallthru
          _
      $region52: #{tpu_custom_call.1} parent=5 // pred_fallthru
        _
    $region6: #{tpu_custom_call.1} parent=1 // loop_footer
      %s25 = sadd.s32 1, %s21
    $region7: #{tpu_custom_call.1} parent=1 // loop_footer_branch
      %20 = sbr.rel target = $region3
    $region8: #{tpu_custom_call.1} parent=1 // loop_exit
      _
    %633 = vsyncpa [#allocation3], 1
    %s634 = scalar_lea.sflag [#allocation3], 1
    %635 = vsyncpa %s634, 1
    %636 = vsyncpa [#allocation4], 1
    %s637 = scalar_lea.sflag [#allocation4], 1
    %638 = vsyncpa %s637, 1
    %639 = vsyncpa [#allocation7], 1
    %s640 = scalar_lea.sflag [#allocation7], 1
    %641 = vsyncpa %s640, 1

</llo_original>
